<compile_context>
chip_gen: v7x
topology: tpu7x:2x2x1
jax: 0.10.0
libtpu: 0.0.40
codegen_flags: <defaults>
</compile_context>

<pallas_src>
import jax
import jax.numpy as jnp
from jax import lax
from jax.experimental import pallas as pl
from jax.experimental.pallas import tpu as pltpu

_LANES = 128
# 4096 rows * 128 lanes * 4 B = 2 MiB per input block.
_TILE_ROWS = 4096


def _round_up(x, m):
    return ((x + m - 1) // m) * m


def _make_mrae_kernel(tile_r, steps, valid_rows, needs_mask):
    """Kernel closure over static tiling parameters."""

    def mrae_kernel(o_in_ref, l_in_ref, out_ref):
        k = pl.program_id(1)

        # zero this shard's resident accumulator block at the start of its loop
        @pl.when(k == 0)
        def _():
            out_ref[...] = jnp.zeros_like(out_ref)

        o = o_in_ref[...].astype(jnp.float32)
        l = l_in_ref[...].astype(jnp.float32)

        if needs_mask:
            # global row index of every element in this (tile_r, 128) block
            start = (pl.program_id(0) * steps + k) * tile_r
            row = lax.broadcasted_iota(jnp.int32, (tile_r, _LANES), 0) + start
            valid = row < valid_rows
            # mask BEFORE the divide: OOB garbage must never create inf/nan
            num = jnp.where(valid, jnp.abs(o - l), 0.0)
            den = jnp.where(valid, l, 1.0)
            err = num / den
        else:
            err = jnp.abs(o - l) / l                    # (tile_r, 128)

        # fold sublane groups onto the (8, 128) accumulator; no cross-lane work
        out_ref[...] += jnp.sum(
            err.reshape(tile_r // 8, 8, _LANES), axis=0)[None]

    return mrae_kernel


def loss_mrae(outputs, label, *, tile_rows=_TILE_ROWS):
    """MRAE loss identical to the PyTorch Loss_MRAE.forward.

    outputs, label: same-shape arrays (e.g. (N, C, H, W)). Returns an f32 scalar.
    """
    assert outputs.shape == label.shape
    assert tile_rows % 8 == 0 and tile_rows >= 8

    total = outputs.size
    o_flat = outputs.reshape(-1)
    l_flat = label.reshape(-1)

    rem = total % _LANES
    main = total - rem
    rows = main // _LANES
    if rows < 8:
        # Tiny input: not worth a kernel launch; handle fully outside.
        main, rem, rows = 0, total, 0

    # Sub-128-element remainder (or everything, for tiny inputs) in plain jnp.
    if rem:
        o_t = lax.slice(o_flat, (main,), (total,)).astype(jnp.float32)
        l_t = lax.slice(l_flat, (main,), (total,)).astype(jnp.float32)
        tail_sum = jnp.sum(jnp.abs(o_t - l_t) / l_t)
    else:
        tail_sum = jnp.float32(0.0)

    if rows == 0:
        return tail_sum / jnp.float32(total)

    if rem:
        # total not a multiple of 128: the (rows, 128) view needs an aligned
        # prefix.  This slice is the only data copy in the whole loss.
        # TODO(synk): zero-copy ragged path would need manual DMA from pl.ANY.
        o_main = lax.slice(o_flat, (0,), (main,))
        l_main = lax.slice(l_flat, (0,), (main,))
    else:
        o_main = o_flat            # pure metadata reshape below: zero copies
        l_main = l_flat

    o2 = o_main.reshape(rows, _LANES)
    l2 = l_main.reshape(rows, _LANES)

    # Tile never exceeds the row count (avoids block > array), multiple of 8.
    tile_r = min(tile_rows, (rows // 8) * 8)
    num_tiles = pl.cdiv(rows, tile_r)

    # Always give both TensorCores (v7x) a shard when there is >1 tile; odd
    # tile counts get one phantom (fully masked, index-clamped) tile.
    n_shards = 2 if num_tiles >= 2 else 1
    num_tiles_padded = _round_up(num_tiles, n_shards)
    steps = num_tiles_padded // n_shards
    needs_mask = (num_tiles_padded * tile_r) != rows

    last_block = num_tiles - 1
    if num_tiles_padded > num_tiles:
        def in_index_map(s, k):
            # phantom tiles reuse the last real block; their rows are masked
            return (jnp.minimum(s * steps + k, last_block), 0)
    else:
        def in_index_map(s, k):
            return (s * steps + k, 0)

    kernel = _make_mrae_kernel(tile_r, steps, rows, needs_mask)

    partials = pl.pallas_call(
        kernel,
        out_shape=jax.ShapeDtypeStruct((n_shards, 8, _LANES), jnp.float32),
        grid_spec=pltpu.PrefetchScalarGridSpec(
            num_scalar_prefetch=0,
            grid=(n_shards, steps),
            in_specs=[
                pl.BlockSpec((tile_r, _LANES), in_index_map),
                pl.BlockSpec((tile_r, _LANES), in_index_map),
            ],
            out_specs=pl.BlockSpec((1, 8, _LANES), lambda s, k: (s, 0, 0)),
        ),
        compiler_params=pltpu.CompilerParams(
            dimension_semantics=("parallel", "arbitrary"),
        ),
        cost_estimate=pl.CostEstimate(
            flops=4 * main,
            transcendentals=0,
            bytes_accessed=2 * main * outputs.dtype.itemsize,
        ),
    )(o2, l2)

    return (jnp.sum(partials) + tail_sum) / jnp.float32(total)


def loss_mrae_ref(outputs, label):
    """Pure-JAX reference matching the PyTorch semantics."""
    o = outputs.astype(jnp.float32)
    l = label.astype(jnp.float32)
    err = jnp.abs(o - l) / l
    return jnp.mean(err.reshape(-1))


if __name__ == "__main__":
    key = jax.random.PRNGKey(0)

    def check(idx, shape, **kw):
        k1, k2 = jax.random.split(jax.random.fold_in(key, idx))
        # label strictly positive (realistic spectral data; avoids div-by-zero)
        label = jax.random.uniform(k1, shape, jnp.float32, 0.1, 1.1)
        outputs = jax.random.uniform(k2, shape, jnp.float32, 0.0, 1.0)
        got = jax.block_until_ready(loss_mrae(outputs, label, **kw))
        want = loss_mrae_ref(outputs, label)
        assert jnp.allclose(got, want, rtol=1e-5, atol=1e-5), (shape, got, want)

    # main case: fully aligned (2048 elements), single full tile
    check(0, (2, 4, 16, 16))
    # ragged case: 16864 elements (not a multiple of 128) -> jnp tail,
    # masked partial last tile, both shards active
    check(1, (2, 31, 16, 17))
    # odd tile count -> phantom (clamped + masked) tile keeps both shards busy
    check(2, (3, 4, 16, 16), tile_rows=8)

    print("KERNEL_OK")
</pallas_src>

<mosaic_0001>
module attributes {stable_mosaic.version = 11 : i64} {
  func.func @mrae_kernel(%arg0: i32, %arg1: i32, %arg2: memref<16x128xf32, #tpu.memory_space<vmem>>, %arg3: memref<16x128xf32, #tpu.memory_space<vmem>>, %arg4: memref<1x8x128xf32, #tpu.memory_space<vmem>>) attributes {dimension_semantics = [#tpu.dimension_semantics<parallel>, #tpu.dimension_semantics<arbitrary>], iteration_bounds = array<i64: 1, 1>, scalar_prefetch = 0 : i64, scratch_operands = 0 : i64, tpu.core_type = #tpu.core_type<tc>, window_params = [{transform_indices = @transform_0, window_bounds = array<i64: 16, 128>}, {transform_indices = @transform_1, window_bounds = array<i64: 16, 128>}, {transform_indices = @transform_2, window_bounds = array<i64: 1, 8, 128>}]} {
    %c0_i32 = arith.constant 0 : i32
    %0 = arith.cmpi eq, %arg1, %c0_i32 : i32
    %1 = arith.extui %0 : i1 to i32
    %c0_i32_0 = arith.constant 0 : i32
    %2 = arith.cmpi ne, %1, %c0_i32_0 : i32
    scf.if %2 {
      %cst_10 = arith.constant 0.000000e+00 : f32
      %14 = vector.broadcast %cst_10 : f32 to vector<1x8x128xf32>
      %c0_11 = arith.constant 0 : index
      %c0_12 = arith.constant 0 : index
      %c0_13 = arith.constant 0 : index
      %15 = vector.load %arg4[%c0_11, %c0_12, %c0_13] : memref<1x8x128xf32, #tpu.memory_space<vmem>>, vector<1x8x128xf32>
      tpu.vector_store %arg4[%c0_11, %c0_12, %c0_13], %14 {strides = array<i32>} : memref<1x8x128xf32, #tpu.memory_space<vmem>>, vector<1x8x128xf32>,
    } else {
    }
    %c0 = arith.constant 0 : index
    %c0_1 = arith.constant 0 : index
    %3 = vector.load %arg2[%c0, %c0_1] : memref<16x128xf32, #tpu.memory_space<vmem>>, vector<16x128xf32>
    %c0_2 = arith.constant 0 : index
    %c0_3 = arith.constant 0 : index
    %4 = vector.load %arg3[%c0_2, %c0_3] : memref<16x128xf32, #tpu.memory_space<vmem>>, vector<16x128xf32>
    %5 = arith.subf %3, %4 : vector<16x128xf32>
    %6 = math.absf %5 : vector<16x128xf32>
    %7 = arith.divf %6, %4 : vector<16x128xf32>
    %c0_4 = arith.constant 0 : index
    %c0_5 = arith.constant 0 : index
    %c0_6 = arith.constant 0 : index
    %8 = vector.load %arg4[%c0_4, %c0_5, %c0_6] : memref<1x8x128xf32, #tpu.memory_space<vmem>>, vector<1x8x128xf32>
    %9 = vector.shape_cast %7 : vector<16x128xf32> to vector<2x8x128xf32>
    %cst = arith.constant dense<0.000000e+00> : vector<8x128xf32>
    %10 = vector.multi_reduction <add>, %9, %cst [0] : vector<2x8x128xf32> to vector<8x128xf32>
    %11 = vector.shape_cast %10 : vector<8x128xf32> to vector<1x8x128xf32>
    %12 = arith.addf %8, %11 : vector<1x8x128xf32>
    %c0_7 = arith.constant 0 : index
    %c0_8 = arith.constant 0 : index
    %c0_9 = arith.constant 0 : index
    %13 = vector.load %arg4[%c0_7, %c0_8, %c0_9] : memref<1x8x128xf32, #tpu.memory_space<vmem>>, vector<1x8x128xf32>
    tpu.vector_store %arg4[%c0_7, %c0_8, %c0_9], %12 {strides = array<i32>} : memref<1x8x128xf32, #tpu.memory_space<vmem>>, vector<1x8x128xf32>,
    return
  }
  func.func @transform_0(%arg0: i32, %arg1: i32) -> (i32, i32) {
    %c1_i32 = arith.constant 1 : i32
    %0 = arith.muli %arg0, %c1_i32 : i32
    %1 = arith.addi %0, %arg1 : i32
    %c0_i32 = arith.constant 0 : i32
    %c0_i32_0 = arith.constant 0 : i32
    return %1, %c0_i32 : i32, i32
  }
  func.func @transform_1(%arg0: i32, %arg1: i32) -> (i32, i32) {
    %c1_i32 = arith.constant 1 : i32
    %0 = arith.muli %arg0, %c1_i32 : i32
    %1 = arith.addi %0, %arg1 : i32
    %c0_i32 = arith.constant 0 : i32
    %c0_i32_0 = arith.constant 0 : i32
    return %1, %c0_i32 : i32, i32
  }
  func.func @transform_2(%arg0: i32, %arg1: i32) -> (i32, i32, i32) {
    %c0_i32 = arith.constant 0 : i32
    %c0_i32_0 = arith.constant 0 : i32
    %c0_i32_1 = arith.constant 0 : i32
    return %arg0, %c0_i32, %c0_i32_0 : i32, i32, i32
  }
}

</mosaic_0001>

<llo_original>
// kernel: tpu_custom_call.1
$region0: #{tpu_custom_call.1}
  #allocation0 [shape = 'u32[]', space=smem, size = 0x4, offset = 0x4, fixed_abs, tag = 'smem constant byte address 0x4 - core index']
  #allocation1 [shape = 'u32[144,128]{1,0:T(1,128)}', space=vmem, size = 0x12000, scoped, tag = 'internal scratch']
  %s0 = inlined_call_operand.hbm [shape: f32[16,128], index: 0, kind: input, shape index: {}]
  %s1 = inlined_call_operand.hbm [shape: f32[16,128], index: 1, kind: input, shape index: {}]
  %s2 = inlined_call_operand.hbm [shape: f32[1,8,128], index: 2, kind: output, shape index: {}]
  %s3 = sld [smem:[#allocation0]]
  $region30: #{tpu_custom_call.1} parent=0
    _
  %s5 = ssub.s32 1, %s3
  %s6 = scalar_select 0, %s5, %s3
  $region1: #{tpu_custom_call.1} parent=0
    #allocation2 [shape = 'u8[8192]{0}', space=vmem, size = 0x2000, scoped, tag = 'input window, operand 0, single buffered']
    #allocation3 [shape = 's32[1]{0}', space=sflag, size = 0x4, scoped, tag = 'scoped memory for tpu_custom_call.1']
    #allocation4 [shape = 's32[1]{0}', space=sflag, size = 0x4, scoped, tag = 'scoped memory for tpu_custom_call.1']
    #allocation5 [shape = 'u8[8192]{0}', space=vmem, size = 0x2000, scoped, tag = 'input window, operand 1, single buffered']
    #allocation6 [shape = 's32[1]{0}', space=sflag, size = 0x4, scoped, tag = 'scoped memory for tpu_custom_call.1']
    #allocation7 [shape = 'u8[4096]{0}', space=vmem, size = 0x1000, scoped, tag = 'output window, operand 0, single buffered']
    %7 = vsyncpa [#allocation3], 0
    %8 = vsyncpa [#allocation6], 0
    %9 = vsyncpa [#allocation4], 0
    // Predicated region
    $region2: #{tpu_custom_call.1} parent=1 // pred_check
      _
    $region3: #{tpu_custom_call.1} parent=1 // pred_check_branch
      %11 = sbr.rel (0) target = $region5
    $region4: #{tpu_custom_call.1} parent=1 // pred_region
      %s12 = sadd.s32 0, 0
      %s13 = smul.u32 2, %s12
      %s15 = ssub.s32 256, 256
      %16 = vsyncadd [#allocation3], %s15
      %s17 = smul.addr %s13, 128
      %s18 = scalar_lea.hbm %s0, %s17
      %s19 = sshll.u32 [#allocation2], 4
      %s20 = int_to_ptr.vmem [resolvable:$true] %s19
      %25 = dma.hbm_to_vmem [thread:$0]  %s18, 256, %s20, [#allocation3], 128, 128, 8
    $region5: #{tpu_custom_call.1} parent=1 // pred_fallthru
      _
    // Predicated region
    $region6: #{tpu_custom_call.1} parent=1 // pred_check
      _
    $region7: #{tpu_custom_call.1} parent=1 // pred_check_branch
      %27 = sbr.rel (0) target = $region9
    $region8: #{tpu_custom_call.1} parent=1 // pred_region
      %s28 = sadd.s32 0, 0
      %s29 = smul.u32 2, %s28
      %s31 = ssub.s32 256, 256
      %32 = vsyncadd [#allocation6], %s31
      %s33 = smul.addr %s29, 128
      %s34 = scalar_lea.hbm %s1, %s33
      %s35 = sshll.u32 [#allocation5], 4
      %s36 = int_to_ptr.vmem [resolvable:$true] %s35
      %41 = dma.hbm_to_vmem [thread:$0]  %s34, 256, %s36, [#allocation6], 128, 128, 8
    $region9: #{tpu_custom_call.1} parent=1 // pred_fallthru
      _
    // Predicated region
    $region10: #{tpu_custom_call.1} parent=1 // pred_check
      _
    $region11: #{tpu_custom_call.1} parent=1 // pred_check_branch
      %43 = sbr.rel (0) target = $region13
    $region12: #{tpu_custom_call.1} parent=1 // pred_region
      %44 = dma.done [#allocation3], 256
    $region13: #{tpu_custom_call.1} parent=1 // pred_fallthru
      _
    // Predicated region
    $region14: #{tpu_custom_call.1} parent=1 // pred_check
      _
    $region15: #{tpu_custom_call.1} parent=1 // pred_check_branch
      %46 = sbr.rel (0) target = $region17
    $region16: #{tpu_custom_call.1} parent=1 // pred_region
      %47 = dma.done [#allocation6], 256
    $region17: #{tpu_custom_call.1} parent=1 // pred_fallthru
      _
    %s48 = sadd.s32 0, 0
    %s49 = smul.u32 2, %s48
    %s50 = sadd.s32 0, 0
    %s51 = smul.u32 2, %s50
    %p52 = scmp.eq.s32.totalorder 0, 0
    // Predicated region
    $region18: #{tpu_custom_call.1} parent=1 // pred_check
      %p53 = pneg %p52
    $region19: #{tpu_custom_call.1} parent=1 // pred_check_branch
      %55 = sbr.rel (%p53) target = $region21
    $region20: #{tpu_custom_call.1} parent=1 // pred_region
      %56 = vst [vmem:[#allocation7] sm:$0xff] 0.0
    $region21: #{tpu_custom_call.1} parent=1 // pred_fallthru
      _
    %v57 = vld [vmem:[#allocation2] sm:$0xff]
    %v58 = vld [vmem:[#allocation2 + $0x8] sm:$0xff]
    %v59 = vld [vmem:[#allocation5] sm:$0xff]
    %v60 = vld [vmem:[#allocation5 + $0x8] sm:$0xff]
    %v61 = vsub.f32 %v57, %v59
    %v62 = vsub.f32 %v58, %v60
    %v63 = vand.u32 2147483647, %v61
    %v64 = vand.u32 2147483647, %v62
    %v65 = vrcp.pop %v59
    %v66 = vmul.f32 %v63, %v65
    %v67 = vrcp.pop %v60
    %v68 = vmul.f32 %v64, %v67
    %v69 = vld [vmem:[#allocation7] sm:$0xff]
    %v70 = vadd.f32 %v66, %v68
    %v71 = vadd.f32 %v69, %v70
    %72 = vst [vmem:[#allocation7] sm:$0xff] %v71
    // Predicated region
    $region22: #{tpu_custom_call.1} parent=1 // pred_check
      _
    $region23: #{tpu_custom_call.1} parent=1 // pred_check_branch
      %74 = sbr.rel (0) target = $region25
    $region24: #{tpu_custom_call.1} parent=1 // pred_region
      %s76 = ssub.s32 128, 128
      %77 = vsyncadd [#allocation4], %s76
      %s79 = sshll.u32 [#allocation7], 4
      %s80 = int_to_ptr.vmem [resolvable:$true] %s79
      %82 = dma.vmem_to_hbm [thread:$0]  %s80, 128, %s2, [#allocation4]
    $region25: #{tpu_custom_call.1} parent=1 // pred_fallthru
      _
    // Predicated region
    $region26: #{tpu_custom_call.1} parent=1 // pred_check
      _
    $region27: #{tpu_custom_call.1} parent=1 // pred_check_branch
      %84 = sbr.rel (0) target = $region29
    $region28: #{tpu_custom_call.1} parent=1 // pred_region
      %85 = dma.done [#allocation4], 128
    $region29: #{tpu_custom_call.1} parent=1 // pred_fallthru
      _
    %86 = vsyncpa [#allocation3], 1
    %87 = vsyncpa [#allocation6], 1
    %88 = vsyncpa [#allocation4], 1

</llo_original>
